<compile_context>
chip_gen: v6e
topology: v6e:2x2x1
jax: 0.10.0
libtpu: 0.0.40
codegen_flags: <defaults>
</compile_context>

<pallas_src>
import jax
import jax.numpy as jnp
from jax import lax
from jax.experimental import pallas as pl
from jax.experimental.pallas import tpu as pltpu

SEQ, BATCH = 8, 2
IN_DIM, HID_DIM, OUT_DIM = 2, 3, 1          # RNN(2, 3), Linear(3, 1)
B_PAD, I_PAD, H_PAD, O_PAD = 8, 128, 128, 128


def rnn_kernel(x_ref, wih_ref, whh_ref, b_ref, wl_ref, bl_ref, o_ref):
    """Whole forward pass: input projection (one matmul) + unrolled recurrence
    + relu + linear + sigmoid."""
    seq = x_ref.shape[0] // B_PAD

    # Input projection for ALL timesteps in one MXU op, bias folded in once.
    # (T*B_PAD, I_PAD) @ (I_PAD, H_PAD) -> (T*B_PAD, H_PAD)
    xw = (jnp.dot(x_ref[...], wih_ref[...], preferred_element_type=jnp.float32)
          + b_ref[...])
    whh = whh_ref[...]

    # Unrolled recurrence: only h @ W_hh sits on the serial dependency chain.
    # t = 0: h_prev == 0, so the recurrent matmul is skipped entirely.
    h = jnp.tanh(xw[0:B_PAD, :])                                        # (B_PAD, H_PAD)
    for t in range(1, seq):
        h = jnp.tanh(xw[t * B_PAD:(t + 1) * B_PAD, :]
                     + jnp.dot(h, whh, preferred_element_type=jnp.float32))

    # TODO(synk): for very long SEQ, switch x to a time-gridded BlockSpec with h
    # carried in VMEM scratch instead of one monolithic VMEM block.

    h = jnp.maximum(h, 0.0)                                             # relu
    logits = jnp.dot(h, wl_ref[...], preferred_element_type=jnp.float32) + bl_ref[...]
    o_ref[...] = jax.nn.sigmoid(logits)                                 # (B_PAD, O_PAD)


def pad_params(w_ih, w_hh, b_ih, b_hh, w_l, b_l):
    """Pad/transpose the model weights ONCE (per-model constants, not per-call)."""
    wih_t = jnp.zeros((I_PAD, H_PAD), jnp.float32).at[:IN_DIM, :HID_DIM].set(w_ih.T)
    whh_t = jnp.zeros((H_PAD, H_PAD), jnp.float32).at[:HID_DIM, :HID_DIM].set(w_hh.T)
    b = jnp.zeros((1, H_PAD), jnp.float32).at[0, :HID_DIM].set(b_ih + b_hh)
    wl_t = jnp.zeros((H_PAD, O_PAD), jnp.float32).at[:HID_DIM, :OUT_DIM].set(w_l.T)
    bl = jnp.zeros((1, O_PAD), jnp.float32).at[0, :OUT_DIM].set(b_l)
    return wih_t, whh_t, b, wl_t, bl


@jax.jit
def single_user_sequence_model(x, wih_t, whh_t, b, wl_t, bl):
    """x: (T, N, 2) float32, pre-padded weights from pad_params.
    Returns (1, N, 1), matching torch's h layout."""
    T, N, C = x.shape

    # Single cheap pad of the activations; flatten time*batch so the kernel can
    # do the whole input projection as one aligned matmul.
    x_p = lax.pad(x.astype(jnp.float32), jnp.float32(0.0),
                  [(0, 0, 0), (0, B_PAD - N, 0), (0, I_PAD - C, 0)])
    x_flat = x_p.reshape(T * B_PAD, I_PAD)

    out = pl.pallas_call(
        rnn_kernel,
        out_shape=jax.ShapeDtypeStruct((B_PAD, O_PAD), jnp.float32),
        in_specs=[pl.BlockSpec(memory_space=pltpu.MemorySpace.VMEM) for _ in range(6)],
        out_specs=pl.BlockSpec(memory_space=pltpu.MemorySpace.VMEM),
    )(x_flat, wih_t, whh_t, b, wl_t, bl)

    return out[:N, :OUT_DIM][None, :, :]                                # (1, N, 1)


def reference_forward(x, w_ih, w_hh, b_ih, b_hh, w_l, b_l):
    """Pure-JAX reference mirroring torch.nn.RNN + Linear + sigmoid."""
    def step(h, xt):
        h = jnp.tanh(xt @ w_ih.T + b_ih + h @ w_hh.T + b_hh)
        return h, None
    h0 = jnp.zeros((x.shape[1], HID_DIM), jnp.float32)
    h, _ = lax.scan(step, h0, x)
    h = jnp.maximum(h, 0.0)
    return jax.nn.sigmoid(h @ w_l.T + b_l)[None, :, :]


if __name__ == "__main__":
    key = jax.random.PRNGKey(0)
    kx, k1, k2, k3, k4, k5, k6 = jax.random.split(key, 7)

    # Deterministic parameter init (uniform +-1/sqrt(hidden), like torch defaults).
    bound = 1.0 / (HID_DIM ** 0.5)
    w_ih = jax.random.uniform(k1, (HID_DIM, IN_DIM), jnp.float32, -bound, bound)
    w_hh = jax.random.uniform(k2, (HID_DIM, HID_DIM), jnp.float32, -bound, bound)
    b_ih = jax.random.uniform(k3, (HID_DIM,), jnp.float32, -bound, bound)
    b_hh = jax.random.uniform(k4, (HID_DIM,), jnp.float32, -bound, bound)
    w_l = jax.random.uniform(k5, (OUT_DIM, HID_DIM), jnp.float32, -bound, bound)
    b_l = jax.random.uniform(k6, (OUT_DIM,), jnp.float32, -bound, bound)

    x = jax.random.normal(kx, (SEQ, BATCH, IN_DIM), jnp.float32)

    # Pad weights once (per-model constants), then run the jitted forward.
    padded = pad_params(w_ih, w_hh, b_ih, b_hh, w_l, b_l)
    out = single_user_sequence_model(x, *padded)
    out = jax.block_until_ready(out)

    ref = reference_forward(x, w_ih, w_hh, b_ih, b_hh, w_l, b_l)
    assert out.shape == (1, BATCH, OUT_DIM), out.shape
    assert jnp.allclose(out, ref, atol=1e-5, rtol=1e-5), (out, ref)
    print("KERNEL_OK")
</pallas_src>

<mosaic_0001>
module attributes {stable_mosaic.version = 11 : i64} {
  func.func @rnn_kernel(%arg0: memref<64x128xf32, #tpu.memory_space<vmem>>, %arg1: memref<128x128xf32, #tpu.memory_space<vmem>>, %arg2: memref<128x128xf32, #tpu.memory_space<vmem>>, %arg3: memref<1x128xf32, #tpu.memory_space<vmem>>, %arg4: memref<128x128xf32, #tpu.memory_space<vmem>>, %arg5: memref<1x128xf32, #tpu.memory_space<vmem>>, %arg6: memref<8x128xf32, #tpu.memory_space<vmem>>) attributes {dimension_semantics = [], scalar_prefetch = 0 : i64, scratch_operands = 0 : i64, tpu.core_type = #tpu.core_type<tc>} {
    %c0 = arith.constant 0 : index
    %c0_0 = arith.constant 0 : index
    %0 = vector.load %arg0[%c0, %c0_0] : memref<64x128xf32, #tpu.memory_space<vmem>>, vector<64x128xf32>
    %c0_1 = arith.constant 0 : index
    %c0_2 = arith.constant 0 : index
    %1 = vector.load %arg1[%c0_1, %c0_2] : memref<128x128xf32, #tpu.memory_space<vmem>>, vector<128x128xf32>
    %cst = arith.constant dense<0.000000e+00> : vector<64x128xf32>
    %2 = tpu.matmul %0, %1, %cst {dimension_numbers = #tpu.dot_dimension_numbers<[1], [0], [0], [1], [0, 0, 1, 1], [], []>} : vector<64x128xf32>, vector<128x128xf32>, vector<64x128xf32> -> vector<64x128xf32>
    %c0_3 = arith.constant 0 : index
    %c0_4 = arith.constant 0 : index
    %3 = vector.load %arg3[%c0_3, %c0_4] : memref<1x128xf32, #tpu.memory_space<vmem>>, vector<1x128xf32>
    %4 = vector.broadcast %3 : vector<1x128xf32> to vector<64x128xf32>
    %5 = arith.addf %2, %4 : vector<64x128xf32>
    %c0_5 = arith.constant 0 : index
    %c0_6 = arith.constant 0 : index
    %6 = vector.load %arg2[%c0_5, %c0_6] : memref<128x128xf32, #tpu.memory_space<vmem>>, vector<128x128xf32>
    %7 = vector.extract_strided_slice %5 {offsets = [0, 0], sizes = [8, 128], strides = [1, 1]} : vector<64x128xf32> to vector<8x128xf32>
    %8 = math.tanh %7 : vector<8x128xf32>
    %9 = vector.extract_strided_slice %5 {offsets = [8, 0], sizes = [8, 128], strides = [1, 1]} : vector<64x128xf32> to vector<8x128xf32>
    %cst_7 = arith.constant dense<0.000000e+00> : vector<8x128xf32>
    %10 = tpu.matmul %8, %6, %cst_7 {dimension_numbers = #tpu.dot_dimension_numbers<[1], [0], [0], [1], [0, 0, 1, 1], [], []>} : vector<8x128xf32>, vector<128x128xf32>, vector<8x128xf32> -> vector<8x128xf32>
    %11 = arith.addf %9, %10 : vector<8x128xf32>
    %12 = math.tanh %11 : vector<8x128xf32>
    %13 = vector.extract_strided_slice %5 {offsets = [16, 0], sizes = [8, 128], strides = [1, 1]} : vector<64x128xf32> to vector<8x128xf32>
    %cst_8 = arith.constant dense<0.000000e+00> : vector<8x128xf32>
    %14 = tpu.matmul %12, %6, %cst_8 {dimension_numbers = #tpu.dot_dimension_numbers<[1], [0], [0], [1], [0, 0, 1, 1], [], []>} : vector<8x128xf32>, vector<128x128xf32>, vector<8x128xf32> -> vector<8x128xf32>
    %15 = arith.addf %13, %14 : vector<8x128xf32>
    %16 = math.tanh %15 : vector<8x128xf32>
    %17 = vector.extract_strided_slice %5 {offsets = [24, 0], sizes = [8, 128], strides = [1, 1]} : vector<64x128xf32> to vector<8x128xf32>
    %cst_9 = arith.constant dense<0.000000e+00> : vector<8x128xf32>
    %18 = tpu.matmul %16, %6, %cst_9 {dimension_numbers = #tpu.dot_dimension_numbers<[1], [0], [0], [1], [0, 0, 1, 1], [], []>} : vector<8x128xf32>, vector<128x128xf32>, vector<8x128xf32> -> vector<8x128xf32>
    %19 = arith.addf %17, %18 : vector<8x128xf32>
    %20 = math.tanh %19 : vector<8x128xf32>
    %21 = vector.extract_strided_slice %5 {offsets = [32, 0], sizes = [8, 128], strides = [1, 1]} : vector<64x128xf32> to vector<8x128xf32>
    %cst_10 = arith.constant dense<0.000000e+00> : vector<8x128xf32>
    %22 = tpu.matmul %20, %6, %cst_10 {dimension_numbers = #tpu.dot_dimension_numbers<[1], [0], [0], [1], [0, 0, 1, 1], [], []>} : vector<8x128xf32>, vector<128x128xf32>, vector<8x128xf32> -> vector<8x128xf32>
    %23 = arith.addf %21, %22 : vector<8x128xf32>
    %24 = math.tanh %23 : vector<8x128xf32>
    %25 = vector.extract_strided_slice %5 {offsets = [40, 0], sizes = [8, 128], strides = [1, 1]} : vector<64x128xf32> to vector<8x128xf32>
    %cst_11 = arith.constant dense<0.000000e+00> : vector<8x128xf32>
    %26 = tpu.matmul %24, %6, %cst_11 {dimension_numbers = #tpu.dot_dimension_numbers<[1], [0], [0], [1], [0, 0, 1, 1], [], []>} : vector<8x128xf32>, vector<128x128xf32>, vector<8x128xf32> -> vector<8x128xf32>
    %27 = arith.addf %25, %26 : vector<8x128xf32>
    %28 = math.tanh %27 : vector<8x128xf32>
    %29 = vector.extract_strided_slice %5 {offsets = [48, 0], sizes = [8, 128], strides = [1, 1]} : vector<64x128xf32> to vector<8x128xf32>
    %cst_12 = arith.constant dense<0.000000e+00> : vector<8x128xf32>
    %30 = tpu.matmul %28, %6, %cst_12 {dimension_numbers = #tpu.dot_dimension_numbers<[1], [0], [0], [1], [0, 0, 1, 1], [], []>} : vector<8x128xf32>, vector<128x128xf32>, vector<8x128xf32> -> vector<8x128xf32>
    %31 = arith.addf %29, %30 : vector<8x128xf32>
    %32 = math.tanh %31 : vector<8x128xf32>
    %33 = vector.extract_strided_slice %5 {offsets = [56, 0], sizes = [8, 128], strides = [1, 1]} : vector<64x128xf32> to vector<8x128xf32>
    %cst_13 = arith.constant dense<0.000000e+00> : vector<8x128xf32>
    %34 = tpu.matmul %32, %6, %cst_13 {dimension_numbers = #tpu.dot_dimension_numbers<[1], [0], [0], [1], [0, 0, 1, 1], [], []>} : vector<8x128xf32>, vector<128x128xf32>, vector<8x128xf32> -> vector<8x128xf32>
    %35 = arith.addf %33, %34 : vector<8x128xf32>
    %36 = math.tanh %35 : vector<8x128xf32>
    %cst_14 = arith.constant 0.000000e+00 : f32
    %37 = vector.broadcast %cst_14 : f32 to vector<8x128xf32>
    %38 = arith.maximumf %36, %37 : vector<8x128xf32>
    %c0_15 = arith.constant 0 : index
    %c0_16 = arith.constant 0 : index
    %39 = vector.load %arg4[%c0_15, %c0_16] : memref<128x128xf32, #tpu.memory_space<vmem>>, vector<128x128xf32>
    %cst_17 = arith.constant dense<0.000000e+00> : vector<8x128xf32>
    %40 = tpu.matmul %38, %39, %cst_17 {dimension_numbers = #tpu.dot_dimension_numbers<[1], [0], [0], [1], [0, 0, 1, 1], [], []>} : vector<8x128xf32>, vector<128x128xf32>, vector<8x128xf32> -> vector<8x128xf32>
    %c0_18 = arith.constant 0 : index
    %c0_19 = arith.constant 0 : index
    %41 = vector.load %arg5[%c0_18, %c0_19] : memref<1x128xf32, #tpu.memory_space<vmem>>, vector<1x128xf32>
    %42 = vector.broadcast %41 : vector<1x128xf32> to vector<8x128xf32>
    %43 = arith.addf %40, %42 : vector<8x128xf32>
    %44 = arith.negf %43 : vector<8x128xf32>
    %45 = math.exp %44 : vector<8x128xf32>
    %cst_20 = arith.constant 1.000000e+00 : f32
    %46 = vector.broadcast %cst_20 : f32 to vector<8x128xf32>
    %47 = arith.addf %46, %45 : vector<8x128xf32>
    %48 = arith.divf %46, %47 : vector<8x128xf32>
    %c0_21 = arith.constant 0 : index
    %c0_22 = arith.constant 0 : index
    %49 = vector.load %arg6[%c0_21, %c0_22] : memref<8x128xf32, #tpu.memory_space<vmem>>, vector<8x128xf32>
    tpu.vector_store %arg6[%c0_21, %c0_22], %48 {strides = array<i32>} : memref<8x128xf32, #tpu.memory_space<vmem>>, vector<8x128xf32>,
    return
  }
}

</mosaic_0001>

<llo_original>
// kernel: single_user_sequence_model.1
$region0: #{single_user_sequence_model.1}
  #allocation0 [shape = 'u32[]', space=smem, size = 0x4, offset = 0x4, fixed_abs, tag = 'smem constant byte address 0x4 - core index']
  #allocation1 [shape = 'u32[144,128]{1,0:T(1,128)}', space=vmem, size = 0x12000, scoped, tag = 'internal scratch']
  %s0 = inlined_call_operand.vmem [shape: f32[64,128], index: 0, kind: input, shape index: {}]
  %s1 = inlined_call_operand.hbm [shape: f32[128,128], index: 1, kind: input, shape index: {}]
  %s2 = inlined_call_operand.hbm [shape: f32[128,128], index: 2, kind: input, shape index: {}]
  %s3 = inlined_call_operand.vmem [shape: f32[1,128], index: 3, kind: input, shape index: {}]
  %s4 = inlined_call_operand.hbm [shape: f32[128,128], index: 4, kind: input, shape index: {}]
  %s5 = inlined_call_operand.vmem [shape: f32[1,128], index: 5, kind: input, shape index: {}]
  %s6 = inlined_call_operand.vmem [shape: f32[8,128], index: 6, kind: output, shape index: {}]
  %s7 = sld [smem:[#allocation0]]
  $region46: #{single_user_sequence_model.1} parent=0
    _
  %s9 = ssub.s32 1, %s7
  %s10 = scalar_select 0, %s9, %s7
  $region1: #{single_user_sequence_model.1} parent=0
    #allocation2 [shape = 'u8[65536]{0}', space=vmem, size = 0x10000, scoped, tag = 'input window, operand 1, single buffered']
    #allocation3 [shape = 's32[1]{0}', space=sflag, size = 0x4, scoped, tag = 'scoped memory for single_user_sequence_model.1']
    #allocation4 [shape = 'u8[65536]{0}', space=vmem, size = 0x10000, scoped, tag = 'input window, operand 2, single buffered']
    #allocation5 [shape = 's32[1]{0}', space=sflag, size = 0x4, scoped, tag = 'scoped memory for single_user_sequence_model.1']
    #allocation6 [shape = 'u8[65536]{0}', space=vmem, size = 0x10000, scoped, tag = 'input window, operand 4, single buffered']
    %11 = vsyncpa [#allocation3], 0
    %12 = vsyncpa [#allocation5], 0
    // Predicated region
    $region2: #{single_user_sequence_model.1} parent=1 // pred_check
      _
    $region3: #{single_user_sequence_model.1} parent=1 // pred_check_branch
      %14 = sbr.rel (0) target = $region5
    $region4: #{single_user_sequence_model.1} parent=1 // pred_region
      _
    $region5: #{single_user_sequence_model.1} parent=1 // pred_fallthru
      _
    // Predicated region
    $region6: #{single_user_sequence_model.1} parent=1 // pred_check
      _
    $region7: #{single_user_sequence_model.1} parent=1 // pred_check_branch
      %16 = sbr.rel (0) target = $region9
    $region8: #{single_user_sequence_model.1} parent=1 // pred_region
      %s18 = ssub.s32 2048, 2048
      %19 = vsyncadd [#allocation3], %s18
      %s20 = sshll.u32 [#allocation2], 4
      %s21 = int_to_ptr.vmem [resolvable:$true] %s20
      %26 = dma.hbm_to_vmem [thread:$0]  %s1, 2048, %s21, [#allocation3], 128, 128, 8
    $region9: #{single_user_sequence_model.1} parent=1 // pred_fallthru
      _
    // Predicated region
    $region10: #{single_user_sequence_model.1} parent=1 // pred_check
      _
    $region11: #{single_user_sequence_model.1} parent=1 // pred_check_branch
      %28 = sbr.rel (0) target = $region13
    $region12: #{single_user_sequence_model.1} parent=1 // pred_region
      %s30 = ssub.s32 2048, 2048
      %31 = vsyncadd [#allocation5], %s30
      %s32 = sshll.u32 [#allocation4], 4
      %s33 = int_to_ptr.vmem [resolvable:$true] %s32
      %38 = dma.hbm_to_vmem [thread:$0]  %s2, 2048, %s33, [#allocation5], 128, 128, 8
    $region13: #{single_user_sequence_model.1} parent=1 // pred_fallthru
      _
    // Predicated region
    $region14: #{single_user_sequence_model.1} parent=1 // pred_check
      _
    $region15: #{single_user_sequence_model.1} parent=1 // pred_check_branch
      %40 = sbr.rel (0) target = $region17
    $region16: #{single_user_sequence_model.1} parent=1 // pred_region
      _
    $region17: #{single_user_sequence_model.1} parent=1 // pred_fallthru
      _
    // Predicated region
    $region18: #{single_user_sequence_model.1} parent=1 // pred_check
      _
    $region19: #{single_user_sequence_model.1} parent=1 // pred_check_branch
      %42 = sbr.rel (0) target = $region21
    $region20: #{single_user_sequence_model.1} parent=1 // pred_region
      %s44 = ssub.s32 2048, 2048
      %45 = vsyncadd [#allocation5], %s44
      %s46 = sshll.u32 [#allocation6], 4
      %s47 = int_to_ptr.vmem [resolvable:$true] %s46
      %52 = dma.hbm_to_vmem [thread:$0]  %s4, 2048, %s47, [#allocation5], 128, 128, 8
    $region21: #{single_user_sequence_model.1} parent=1 // pred_fallthru
      _
    // Predicated region
    $region22: #{single_user_sequence_model.1} parent=1 // pred_check
      _
    $region23: #{single_user_sequence_model.1} parent=1 // pred_check_branch
      %54 = sbr.rel (0) target = $region25
    $region24: #{single_user_sequence_model.1} parent=1 // pred_region
      _
    $region25: #{single_user_sequence_model.1} parent=1 // pred_fallthru
      _
    // Predicated region
    $region26: #{single_user_sequence_model.1} parent=1 // pred_check
      _
    $region27: #{single_user_sequence_model.1} parent=1 // pred_check_branch
      %56 = sbr.rel (0) target = $region29
    $region28: #{single_user_sequence_model.1} parent=1 // pred_region
      %57 = dma.done [#allocation3], 2048
    $region29: #{single_user_sequence_model.1} parent=1 // pred_fallthru
      _
    // Predicated region
    $region30: #{single_user_sequence_model.1} parent=1 // pred_check
      _
    $region31: #{single_user_sequence_model.1} parent=1 // pred_check_branch
      %59 = sbr.rel (0) target = $region33
    $region32: #{single_user_sequence_model.1} parent=1 // pred_region
      %60 = dma.done [#allocation5], 2048
    $region33: #{single_user_sequence_model.1} parent=1 // pred_fallthru
      _
    // Predicated region
    $region34: #{single_user_sequence_model.1} parent=1 // pred_check
      _
    $region35: #{single_user_sequence_model.1} parent=1 // pred_check_branch
      %62 = sbr.rel (0) target = $region37
    $region36: #{single_user_sequence_model.1} parent=1 // pred_region
      %63 = dma.done [#allocation5], 2048
    $region37: #{single_user_sequence_model.1} parent=1 // pred_fallthru
      _
    %v64 = vld [vmem:[%s0] sm:$0xff]
    %v65 = vld [vmem:[%s0 + $0x8] sm:$0xff]
    %v66 = vld [vmem:[%s0 + $0x10] sm:$0xff]
    %v67 = vld [vmem:[%s0 + $0x18] sm:$0xff]
    %v68 = vld [vmem:[%s0 + $0x20] sm:$0xff]
    %v69 = vld [vmem:[%s0 + $0x28] sm:$0xff]
    %v70 = vld [vmem:[%s0 + $0x30] sm:$0xff]
    %v71 = vld [vmem:[%s0 + $0x38] sm:$0xff]
    %v72 = vld [vmem:[#allocation2] sm:$0xff]
    %v73 = vld [vmem:[#allocation2 + $0x8] sm:$0xff]
    %v74 = vld [vmem:[#allocation2 + $0x10] sm:$0xff]
    %v75 = vld [vmem:[#allocation2 + $0x18] sm:$0xff]
    %v76 = vld [vmem:[#allocation2 + $0x20] sm:$0xff]
    %v77 = vld [vmem:[#allocation2 + $0x28] sm:$0xff]
    %v78 = vld [vmem:[#allocation2 + $0x30] sm:$0xff]
    %v79 = vld [vmem:[#allocation2 + $0x38] sm:$0xff]
    %v80 = vld [vmem:[#allocation2 + $0x40] sm:$0xff]
    %v81 = vld [vmem:[#allocation2 + $0x48] sm:$0xff]
    %v82 = vld [vmem:[#allocation2 + $0x50] sm:$0xff]
    %v83 = vld [vmem:[#allocation2 + $0x58] sm:$0xff]
    %v84 = vld [vmem:[#allocation2 + $0x60] sm:$0xff]
    %v85 = vld [vmem:[#allocation2 + $0x68] sm:$0xff]
    %v86 = vld [vmem:[#allocation2 + $0x70] sm:$0xff]
    %v87 = vld [vmem:[#allocation2 + $0x78] sm:$0xff]
    %v88 = vld [vmem:[%s3] sm:$0x1]
    %v90 = vlaneseq
    %v91 = vshrl.u32 %v90, 7
    %v92 = vsub.s32 0, %v91
    %v93 = vrot.slane %v88, %v92
    %95 = vmatprep.subr.mxu0 0.0
    %96 = vmatpush1.msra.mxu0 %v87
    %97 = vmatprep.subr.mxu0 0.0
    %98 = vmatpush1.msra.mxu0 %v86
    %99 = vmatprep.subr.mxu0 0.0
    %100 = vmatpush1.msra.mxu0 %v85
    %101 = vmatprep.subr.mxu0 0.0
    %102 = vmatpush1.msra.mxu0 %v84
    %103 = vmatprep.subr.mxu0 0.0
    %104 = vmatpush1.msra.mxu0 %v83
    %105 = vmatprep.subr.mxu0 0.0
    %106 = vmatpush1.msra.mxu0 %v82
    %107 = vmatprep.subr.mxu0 0.0
    %108 = vmatpush1.msra.mxu0 %v81
    %109 = vmatprep.subr.mxu0 0.0
    %110 = vmatpush1.msra.mxu0 %v80
    %111 = vmatprep.subr.mxu0 0.0
    %112 = vmatpush1.msra.mxu0 %v79
    %113 = vmatprep.subr.mxu0 0.0
    %114 = vmatpush1.msra.mxu0 %v78
    %115 = vmatprep.subr.mxu0 0.0
    %116 = vmatpush1.msra.mxu0 %v77
    %117 = vmatprep.subr.mxu0 0.0
    %118 = vmatpush1.msra.mxu0 %v76
    %119 = vmatprep.subr.mxu0 0.0
    %120 = vmatpush1.msra.mxu0 %v75
    %121 = vmatprep.subr.mxu0 0.0
    %122 = vmatpush1.msra.mxu0 %v74
    %123 = vmatprep.subr.mxu0 0.0
    %124 = vmatpush1.msra.mxu0 %v73
    %125 = vmatprep.subr.mxu0 0.0
    %126 = vmatpush1.msra.mxu0 %v72
    %127 = vmatprep.subr.mxu0 0.0
    %128 = vmatpush2.msra.mxu0 0.0
    %129 = vmatprep.subr.mxu0 0.0
    %130 = vmatpush2.msra.mxu0 0.0
    %131 = vmatprep.subr.mxu0 0.0
    %132 = vmatpush2.msra.mxu0 0.0
    %133 = vmatprep.subr.mxu0 0.0
    %134 = vmatpush2.msra.mxu0 0.0
    %135 = vmatprep.subr.mxu0 0.0
    %136 = vmatpush2.msra.mxu0 0.0
    %137 = vmatprep.subr.mxu0 0.0
    %138 = vmatpush2.msra.mxu0 0.0
    %139 = vmatprep.subr.mxu0 0.0
    %140 = vmatpush2.msra.mxu0 0.0
    %141 = vmatprep.subr.mxu0 0.0
    %142 = vmatpush2.msra.mxu0 0.0
    %143 = vmatprep.subr.mxu0 0.0
    %144 = vmatpush2.msra.mxu0 0.0
    %145 = vmatprep.subr.mxu0 0.0
    %146 = vmatpush2.msra.mxu0 0.0
    %147 = vmatprep.subr.mxu0 0.0
    %148 = vmatpush2.msra.mxu0 0.0
    %149 = vmatprep.subr.mxu0 0.0
    %150 = vmatpush2.msra.mxu0 0.0
    %151 = vmatprep.subr.mxu0 0.0
    %152 = vmatpush2.msra.mxu0 0.0
    %153 = vmatprep.subr.mxu0 0.0
    %154 = vmatpush2.msra.mxu0 0.0
    %155 = vmatprep.subr.mxu0 0.0
    %156 = vmatpush2.msra.mxu0 0.0
    %157 = vmatprep.subr.mxu0 0.0
    %158 = vmatpush2.msra.mxu0 0.0
    %159 = vmatprep.mubr.f32.mxu0 0.0
    %160 = vmatmul.mubr.f32.gmra.mxu0 %v64
    %v161 = vpop.f32.mrf.mxu0
    %v162 = vadd.f32 %v93, %v161
    %v163 = vpop.f32.mrf.mxu0
    %164 = vmatprep.mubr.f32.mxu0 0.0
    %165 = vmatmul.mubr.f32.gmra.mxu0 %v65
    %v166 = vpop.f32.mrf.mxu0
    %v167 = vadd.f32 %v93, %v166
    %v168 = vpop.f32.mrf.mxu0
    %169 = vmatprep.mubr.f32.mxu0 0.0
    %170 = vmatmul.mubr.f32.gmra.mxu0 %v66
    %v171 = vpop.f32.mrf.mxu0
    %v172 = vadd.f32 %v93, %v171
    %v173 = vpop.f32.mrf.mxu0
    %174 = vmatprep.mubr.f32.mxu0 0.0
    %175 = vmatmul.mubr.f32.gmra.mxu0 %v67
    %v176 = vpop.f32.mrf.mxu0
    %v177 = vadd.f32 %v93, %v176
    %v178 = vpop.f32.mrf.mxu0
    %179 = vmatprep.mubr.f32.mxu0 0.0
    %180 = vmatmul.mubr.f32.gmra.mxu0 %v68
    %v181 = vpop.f32.mrf.mxu0
    %v182 = vadd.f32 %v93, %v181
    %v183 = vpop.f32.mrf.mxu0
    %184 = vmatprep.mubr.f32.mxu0 0.0
    %185 = vmatmul.mubr.f32.gmra.mxu0 %v69
    %v186 = vpop.f32.mrf.mxu0
    %v187 = vadd.f32 %v93, %v186
    %v188 = vpop.f32.mrf.mxu0
    %189 = vmatprep.mubr.f32.mxu0 0.0
    %190 = vmatmul.mubr.f32.gmra.mxu0 %v70
    %v191 = vpop.f32.mrf.mxu0
    %v192 = vadd.f32 %v93, %v191
    %v193 = vpop.f32.mrf.mxu0
    %194 = vmatprep.mubr.f32.mxu0 0.0
    %195 = vmatmul.mubr.f32.gmra.mxu0 %v71
    %v196 = vpop.f32.mrf.mxu0
    %v197 = vadd.f32 %v93, %v196
    %v198 = vpop.f32.mrf.mxu0
    %199 = vdwg.mxu0
    %v200 = vld [vmem:[#allocation4] sm:$0xff]
    %v201 = vld [vmem:[#allocation4 + $0x8] sm:$0xff]
    %v202 = vld [vmem:[#allocation4 + $0x10] sm:$0xff]
    %v203 = vld [vmem:[#allocation4 + $0x18] sm:$0xff]
    %v204 = vld [vmem:[#allocation4 + $0x20] sm:$0xff]
    %v205 = vld [vmem:[#allocation4 + $0x28] sm:$0xff]
    %v206 = vld [vmem:[#allocation4 + $0x30] sm:$0xff]
    %v207 = vld [vmem:[#allocation4 + $0x38] sm:$0xff]
    %v208 = vld [vmem:[#allocation4 + $0x40] sm:$0xff]
    %v209 = vld [vmem:[#allocation4 + $0x48] sm:$0xff]
    %v210 = vld [vmem:[#allocation4 + $0x50] sm:$0xff]
    %v211 = vld [vmem:[#allocation4 + $0x58] sm:$0xff]
    %v212 = vld [vmem:[#allocation4 + $0x60] sm:$0xff]
    %v213 = vld [vmem:[#allocation4 + $0x68] sm:$0xff]
    %v214 = vld [vmem:[#allocation4 + $0x70] sm:$0xff]
    %v215 = vld [vmem:[#allocation4 + $0x78] sm:$0xff]
    %v216 = vtanh.pop %v162
    %217 = vmatprep.subr.mxu0 0.0
    %218 = vmatpush1.msra.mxu0 %v215
    %219 = vmatprep.subr.mxu0 0.0
    %220 = vmatpush1.msra.mxu0 %v214
    %221 = vmatprep.subr.mxu0 0.0
    %222 = vmatpush1.msra.mxu0 %v213
    %223 = vmatprep.subr.mxu0 0.0
    %224 = vmatpush1.msra.mxu0 %v212
    %225 = vmatprep.subr.mxu0 0.0
    %226 = vmatpush1.msra.mxu0 %v211
    %227 = vmatprep.subr.mxu0 0.0
    %228 = vmatpush1.msra.mxu0 %v210
    %229 = vmatprep.subr.mxu0 0.0
    %230 = vmatpush1.msra.mxu0 %v209
    %231 = vmatprep.subr.mxu0 0.0
    %232 = vmatpush1.msra.mxu0 %v208
    %233 = vmatprep.subr.mxu0 0.0
    %234 = vmatpush1.msra.mxu0 %v207
    %235 = vmatprep.subr.mxu0 0.0
    %236 = vmatpush1.msra.mxu0 %v206
    %237 = vmatprep.subr.mxu0 0.0
    %238 = vmatpush1.msra.mxu0 %v205
    %239 = vmatprep.subr.mxu0 0.0
    %240 = vmatpush1.msra.mxu0 %v204
    %241 = vmatprep.subr.mxu0 0.0
    %242 = vmatpush1.msra.mxu0 %v203
    %243 = vmatprep.subr.mxu0 0.0
    %244 = vmatpush1.msra.mxu0 %v202
    %245 = vmatprep.subr.mxu0 0.0
    %246 = vmatpush1.msra.mxu0 %v201
    %247 = vmatprep.subr.mxu0 0.0
    %248 = vmatpush1.msra.mxu0 %v200
    %249 = vmatprep.subr.mxu0 0.0
    %250 = vmatpush2.msra.mxu0 0.0
    %251 = vmatprep.subr.mxu0 0.0
    %252 = vmatpush2.msra.mxu0 0.0
    %253 = vmatprep.subr.mxu0 0.0
    %254 = vmatpush2.msra.mxu0 0.0
    %255 = vmatprep.subr.mxu0 0.0
    %256 = vmatpush2.msra.mxu0 0.0
    %257 = vmatprep.subr.mxu0 0.0
    %258 = vmatpush2.msra.mxu0 0.0
    %259 = vmatprep.subr.mxu0 0.0
    %260 = vmatpush2.msra.mxu0 0.0
    %261 = vmatprep.subr.mxu0 0.0
    %262 = vmatpush2.msra.mxu0 0.0
    %263 = vmatprep.subr.mxu0 0.0
    %264 = vmatpush2.msra.mxu0 0.0
    %265 = vmatprep.subr.mxu0 0.0
    %266 = vmatpush2.msra.mxu0 0.0
    %267 = vmatprep.subr.mxu0 0.0
    %268 = vmatpush2.msra.mxu0 0.0
    %269 = vmatprep.subr.mxu0 0.0
    %270 = vmatpush2.msra.mxu0 0.0
    %271 = vmatprep.subr.mxu0 0.0
    %272 = vmatpush2.msra.mxu0 0.0
    %273 = vmatprep.subr.mxu0 0.0
    %274 = vmatpush2.msra.mxu0 0.0
    %275 = vmatprep.subr.mxu0 0.0
    %276 = vmatpush2.msra.mxu0 0.0
    %277 = vmatprep.subr.mxu0 0.0
    %278 = vmatpush2.msra.mxu0 0.0
    %279 = vmatprep.subr.mxu0 0.0
    %280 = vmatpush2.msra.mxu0 0.0
    %281 = vmatprep.mubr.f32.mxu0 0.0
    %282 = vmatmul.mubr.f32.gmra.mxu0 %v216
    %v283 = vpop.f32.mrf.mxu0
    %v284 = vadd.f32 0.0, %v283
    %v285 = vpop.f32.mrf.mxu0
    %286 = vdwg.mxu0
    %v287 = vadd.f32 %v167, %v284
    %v288 = vtanh.pop %v287
    %289 = vmatprep.subr.mxu0 0.0
    %290 = vmatpush1.msra.mxu0 %v215
    %291 = vmatprep.subr.mxu0 0.0
    %292 = vmatpush1.msra.mxu0 %v214
    %293 = vmatprep.subr.mxu0 0.0
    %294 = vmatpush1.msra.mxu0 %v213
    %295 = vmatprep.subr.mxu0 0.0
    %296 = vmatpush1.msra.mxu0 %v212
    %297 = vmatprep.subr.mxu0 0.0
    %298 = vmatpush1.msra.mxu0 %v211
    %299 = vmatprep.subr.mxu0 0.0
    %300 = vmatpush1.msra.mxu0 %v210
    %301 = vmatprep.subr.mxu0 0.0
    %302 = vmatpush1.msra.mxu0 %v209
    %303 = vmatprep.subr.mxu0 0.0
    %304 = vmatpush1.msra.mxu0 %v208
    %305 = vmatprep.subr.mxu0 0.0
    %306 = vmatpush1.msra.mxu0 %v207
    %307 = vmatprep.subr.mxu0 0.0
    %308 = vmatpush1.msra.mxu0 %v206
    %309 = vmatprep.subr.mxu0 0.0
    %310 = vmatpush1.msra.mxu0 %v205
    %311 = vmatprep.subr.mxu0 0.0
    %312 = vmatpush1.msra.mxu0 %v204
    %313 = vmatprep.subr.mxu0 0.0
    %314 = vmatpush1.msra.mxu0 %v203
    %315 = vmatprep.subr.mxu0 0.0
    %316 = vmatpush1.msra.mxu0 %v202
    %317 = vmatprep.subr.mxu0 0.0
    %318 = vmatpush1.msra.mxu0 %v201
    %319 = vmatprep.subr.mxu0 0.0
    %320 = vmatpush1.msra.mxu0 %v200
    %321 = vmatprep.subr.mxu0 0.0
    %322 = vmatpush2.msra.mxu0 0.0
    %323 = vmatprep.subr.mxu0 0.0
    %324 = vmatpush2.msra.mxu0 0.0
    %325 = vmatprep.subr.mxu0 0.0
    %326 = vmatpush2.msra.mxu0 0.0
    %327 = vmatprep.subr.mxu0 0.0
    %328 = vmatpush2.msra.mxu0 0.0
    %329 = vmatprep.subr.mxu0 0.0
    %330 = vmatpush2.msra.mxu0 0.0
    %331 = vmatprep.subr.mxu0 0.0
    %332 = vmatpush2.msra.mxu0 0.0
    %333 = vmatprep.subr.mxu0 0.0
    %334 = vmatpush2.msra.mxu0 0.0
    %335 = vmatprep.subr.mxu0 0.0
    %336 = vmatpush2.msra.mxu0 0.0
    %337 = vmatprep.subr.mxu0 0.0
    %338 = vmatpush2.msra.mxu0 0.0
    %339 = vmatprep.subr.mxu0 0.0
    %340 = vmatpush2.msra.mxu0 0.0
    %341 = vmatprep.subr.mxu0 0.0
    %342 = vmatpush2.msra.mxu0 0.0
    %343 = vmatprep.subr.mxu0 0.0
    %344 = vmatpush2.msra.mxu0 0.0
    %345 = vmatprep.subr.mxu0 0.0
    %346 = vmatpush2.msra.mxu0 0.0
    %347 = vmatprep.subr.mxu0 0.0
    %348 = vmatpush2.msra.mxu0 0.0
    %349 = vmatprep.subr.mxu0 0.0
    %350 = vmatpush2.msra.mxu0 0.0
    %351 = vmatprep.subr.mxu0 0.0
    %352 = vmatpush2.msra.mxu0 0.0
    %353 = vmatprep.mubr.f32.mxu0 0.0
    %354 = vmatmul.mubr.f32.gmra.mxu0 %v288
    %v355 = vpop.f32.mrf.mxu0
    %v356 = vadd.f32 0.0, %v355
    %v357 = vpop.f32.mrf.mxu0
    %358 = vdwg.mxu0
    %v359 = vadd.f32 %v172, %v356
    %v360 = vtanh.pop %v359
    %361 = vmatprep.subr.mxu0 0.0
    %362 = vmatpush1.msra.mxu0 %v215
    %363 = vmatprep.subr.mxu0 0.0
    %364 = vmatpush1.msra.mxu0 %v214
    %365 = vmatprep.subr.mxu0 0.0
    %366 = vmatpush1.msra.mxu0 %v213
    %367 = vmatprep.subr.mxu0 0.0
    %368 = vmatpush1.msra.mxu0 %v212
    %369 = vmatprep.subr.mxu0 0.0
    %370 = vmatpush1.msra.mxu0 %v211
    %371 = vmatprep.subr.mxu0 0.0
    %372 = vmatpush1.msra.mxu0 %v210
    %373 = vmatprep.subr.mxu0 0.0
    %374 = vmatpush1.msra.mxu0 %v209
    %375 = vmatprep.subr.mxu0 0.0
    %376 = vmatpush1.msra.mxu0 %v208
    %377 = vmatprep.subr.mxu0 0.0
    %378 = vmatpush1.msra.mxu0 %v207
    %379 = vmatprep.subr.mxu0 0.0
    %380 = vmatpush1.msra.mxu0 %v206
    %381 = vmatprep.subr.mxu0 0.0
    %382 = vmatpush1.msra.mxu0 %v205
    %383 = vmatprep.subr.mxu0 0.0
    %384 = vmatpush1.msra.mxu0 %v204
    %385 = vmatprep.subr.mxu0 0.0
    %386 = vmatpush1.msra.mxu0 %v203
    %387 = vmatprep.subr.mxu0 0.0
    %388 = vmatpush1.msra.mxu0 %v202
    %389 = vmatprep.subr.mxu0 0.0
    %390 = vmatpush1.msra.mxu0 %v201
    %391 = vmatprep.subr.mxu0 0.0
    %392 = vmatpush1.msra.mxu0 %v200
    %393 = vmatprep.subr.mxu0 0.0
    %394 = vmatpush2.msra.mxu0 0.0
    %395 = vmatprep.subr.mxu0 0.0
    %396 = vmatpush2.msra.mxu0 0.0
    %397 = vmatprep.subr.mxu0 0.0
    %398 = vmatpush2.msra.mxu0 0.0
    %399 = vmatprep.subr.mxu0 0.0
    %400 = vmatpush2.msra.mxu0 0.0
    %401 = vmatprep.subr.mxu0 0.0
    %402 = vmatpush2.msra.mxu0 0.0
    %403 = vmatprep.subr.mxu0 0.0
    %404 = vmatpush2.msra.mxu0 0.0
    %405 = vmatprep.subr.mxu0 0.0
    %406 = vmatpush2.msra.mxu0 0.0
    %407 = vmatprep.subr.mxu0 0.0
    %408 = vmatpush2.msra.mxu0 0.0
    %409 = vmatprep.subr.mxu0 0.0
    %410 = vmatpush2.msra.mxu0 0.0
    %411 = vmatprep.subr.mxu0 0.0
    %412 = vmatpush2.msra.mxu0 0.0
    %413 = vmatprep.subr.mxu0 0.0
    %414 = vmatpush2.msra.mxu0 0.0
    %415 = vmatprep.subr.mxu0 0.0
    %416 = vmatpush2.msra.mxu0 0.0
    %417 = vmatprep.subr.mxu0 0.0
    %418 = vmatpush2.msra.mxu0 0.0
    %419 = vmatprep.subr.mxu0 0.0
    %420 = vmatpush2.msra.mxu0 0.0
    %421 = vmatprep.subr.mxu0 0.0
    %422 = vmatpush2.msra.mxu0 0.0
    %423 = vmatprep.subr.mxu0 0.0
    %424 = vmatpush2.msra.mxu0 0.0
    %425 = vmatprep.mubr.f32.mxu0 0.0
    %426 = vmatmul.mubr.f32.gmra.mxu0 %v360
    %v427 = vpop.f32.mrf.mxu0
    %v428 = vadd.f32 0.0, %v427
    %v429 = vpop.f32.mrf.mxu0
    %430 = vdwg.mxu0
    %v431 = vadd.f32 %v177, %v428
    %v432 = vtanh.pop %v431
    %433 = vmatprep.subr.mxu0 0.0
    %434 = vmatpush1.msra.mxu0 %v215
    %435 = vmatprep.subr.mxu0 0.0
    %436 = vmatpush1.msra.mxu0 %v214
    %437 = vmatprep.subr.mxu0 0.0
    %438 = vmatpush1.msra.mxu0 %v213
    %439 = vmatprep.subr.mxu0 0.0
    %440 = vmatpush1.msra.mxu0 %v212
    %441 = vmatprep.subr.mxu0 0.0
    %442 = vmatpush1.msra.mxu0 %v211
    %443 = vmatprep.subr.mxu0 0.0
    %444 = vmatpush1.msra.mxu0 %v210
    %445 = vmatprep.subr.mxu0 0.0
    %446 = vmatpush1.msra.mxu0 %v209
    %447 = vmatprep.subr.mxu0 0.0
    %448 = vmatpush1.msra.mxu0 %v208
    %449 = vmatprep.subr.mxu0 0.0
    %450 = vmatpush1.msra.mxu0 %v207
    %451 = vmatprep.subr.mxu0 0.0
    %452 = vmatpush1.msra.mxu0 %v206
    %453 = vmatprep.subr.mxu0 0.0
    %454 = vmatpush1.msra.mxu0 %v205
    %455 = vmatprep.subr.mxu0 0.0
    %456 = vmatpush1.msra.mxu0 %v204
    %457 = vmatprep.subr.mxu0 0.0
    %458 = vmatpush1.msra.mxu0 %v203
    %459 = vmatprep.subr.mxu0 0.0
    %460 = vmatpush1.msra.mxu0 %v202
    %461 = vmatprep.subr.mxu0 0.0
    %462 = vmatpush1.msra.mxu0 %v201
    %463 = vmatprep.subr.mxu0 0.0
    %464 = vmatpush1.msra.mxu0 %v200
    %465 = vmatprep.subr.mxu0 0.0
    %466 = vmatpush2.msra.mxu0 0.0
    %467 = vmatprep.subr.mxu0 0.0
    %468 = vmatpush2.msra.mxu0 0.0
    %469 = vmatprep.subr.mxu0 0.0
    %470 = vmatpush2.msra.mxu0 0.0
    %471 = vmatprep.subr.mxu0 0.0
    %472 = vmatpush2.msra.mxu0 0.0
    %473 = vmatprep.subr.mxu0 0.0
    %474 = vmatpush2.msra.mxu0 0.0
    %475 = vmatprep.subr.mxu0 0.0
    %476 = vmatpush2.msra.mxu0 0.0
    %477 = vmatprep.subr.mxu0 0.0
    %478 = vmatpush2.msra.mxu0 0.0
    %479 = vmatprep.subr.mxu0 0.0
    %480 = vmatpush2.msra.mxu0 0.0
    %481 = vmatprep.subr.mxu0 0.0
    %482 = vmatpush2.msra.mxu0 0.0
    %483 = vmatprep.subr.mxu0 0.0
    %484 = vmatpush2.msra.mxu0 0.0
    %485 = vmatprep.subr.mxu0 0.0
    %486 = vmatpush2.msra.mxu0 0.0
    %487 = vmatprep.subr.mxu0 0.0
    %488 = vmatpush2.msra.mxu0 0.0
    %489 = vmatprep.subr.mxu0 0.0
    %490 = vmatpush2.msra.mxu0 0.0
    %491 = vmatprep.subr.mxu0 0.0
    %492 = vmatpush2.msra.mxu0 0.0
    %493 = vmatprep.subr.mxu0 0.0
    %494 = vmatpush2.msra.mxu0 0.0
    %495 = vmatprep.subr.mxu0 0.0
    %496 = vmatpush2.msra.mxu0 0.0
    %497 = vmatprep.mubr.f32.mxu0 0.0
    %498 = vmatmul.mubr.f32.gmra.mxu0 %v432
    %v499 = vpop.f32.mrf.mxu0
    %v500 = vadd.f32 0.0, %v499
    %v501 = vpop.f32.mrf.mxu0
    %502 = vdwg.mxu0
    %v503 = vadd.f32 %v182, %v500
    %v504 = vtanh.pop %v503
    %505 = vmatprep.subr.mxu0 0.0
    %506 = vmatpush1.msra.mxu0 %v215
    %507 = vmatprep.subr.mxu0 0.0
    %508 = vmatpush1.msra.mxu0 %v214
    %509 = vmatprep.subr.mxu0 0.0
    %510 = vmatpush1.msra.mxu0 %v213
    %511 = vmatprep.subr.mxu0 0.0
    %512 = vmatpush1.msra.mxu0 %v212
    %513 = vmatprep.subr.mxu0 0.0
    %514 = vmatpush1.msra.mxu0 %v211
    %515 = vmatprep.subr.mxu0 0.0
    %516 = vmatpush1.msra.mxu0 %v210
    %517 = vmatprep.subr.mxu0 0.0
    %518 = vmatpush1.msra.mxu0 %v209
    %519 = vmatprep.subr.mxu0 0.0
    %520 = vmatpush1.msra.mxu0 %v208
    %521 = vmatprep.subr.mxu0 0.0
    %522 = vmatpush1.msra.mxu0 %v207
    %523 = vmatprep.subr.mxu0 0.0
    %524 = vmatpush1.msra.mxu0 %v206
    %525 = vmatprep.subr.mxu0 0.0
    %526 = vmatpush1.msra.mxu0 %v205
    %527 = vmatprep.subr.mxu0 0.0
    %528 = vmatpush1.msra.mxu0 %v204
    %529 = vmatprep.subr.mxu0 0.0
    %530 = vmatpush1.msra.mxu0 %v203
    %531 = vmatprep.subr.mxu0 0.0
    %532 = vmatpush1.msra.mxu0 %v202
    %533 = vmatprep.subr.mxu0 0.0
    %534 = vmatpush1.msra.mxu0 %v201
    %535 = vmatprep.subr.mxu0 0.0
    %536 = vmatpush1.msra.mxu0 %v200
    %537 = vmatprep.subr.mxu0 0.0
    %538 = vmatpush2.msra.mxu0 0.0
    %539 = vmatprep.subr.mxu0 0.0
    %540 = vmatpush2.msra.mxu0 0.0
    %541 = vmatprep.subr.mxu0 0.0
    %542 = vmatpush2.msra.mxu0 0.0
    %543 = vmatprep.subr.mxu0 0.0
    %544 = vmatpush2.msra.mxu0 0.0
    %545 = vmatprep.subr.mxu0 0.0
    %546 = vmatpush2.msra.mxu0 0.0
    %547 = vmatprep.subr.mxu0 0.0
    %548 = vmatpush2.msra.mxu0 0.0
    %549 = vmatprep.subr.mxu0 0.0
    %550 = vmatpush2.msra.mxu0 0.0
    %551 = vmatprep.subr.mxu0 0.0
    %552 = vmatpush2.msra.mxu0 0.0
    %553 = vmatprep.subr.mxu0 0.0
    %554 = vmatpush2.msra.mxu0 0.0
    %555 = vmatprep.subr.mxu0 0.0
    %556 = vmatpush2.msra.mxu0 0.0
    %557 = vmatprep.subr.mxu0 0.0
    %558 = vmatpush2.msra.mxu0 0.0
    %559 = vmatprep.subr.mxu0 0.0
    %560 = vmatpush2.msra.mxu0 0.0
    %561 = vmatprep.subr.mxu0 0.0
    %562 = vmatpush2.msra.mxu0 0.0
    %563 = vmatprep.subr.mxu0 0.0
    %564 = vmatpush2.msra.mxu0 0.0
    %565 = vmatprep.subr.mxu0 0.0
    %566 = vmatpush2.msra.mxu0 0.0
    %567 = vmatprep.subr.mxu0 0.0
    %568 = vmatpush2.msra.mxu0 0.0
    %569 = vmatprep.mubr.f32.mxu0 0.0
    %570 = vmatmul.mubr.f32.gmra.mxu0 %v504
    %v571 = vpop.f32.mrf.mxu0
    %v572 = vadd.f32 0.0, %v571
    %v573 = vpop.f32.mrf.mxu0
    %574 = vdwg.mxu0
    %v575 = vadd.f32 %v187, %v572
    %v576 = vtanh.pop %v575
    %577 = vmatprep.subr.mxu0 0.0
    %578 = vmatpush1.msra.mxu0 %v215
    %579 = vmatprep.subr.mxu0 0.0
    %580 = vmatpush1.msra.mxu0 %v214
    %581 = vmatprep.subr.mxu0 0.0
    %582 = vmatpush1.msra.mxu0 %v213
    %583 = vmatprep.subr.mxu0 0.0
    %584 = vmatpush1.msra.mxu0 %v212
    %585 = vmatprep.subr.mxu0 0.0
    %586 = vmatpush1.msra.mxu0 %v211
    %587 = vmatprep.subr.mxu0 0.0
    %588 = vmatpush1.msra.mxu0 %v210
    %589 = vmatprep.subr.mxu0 0.0
    %590 = vmatpush1.msra.mxu0 %v209
    %591 = vmatprep.subr.mxu0 0.0
    %592 = vmatpush1.msra.mxu0 %v208
    %593 = vmatprep.subr.mxu0 0.0
    %594 = vmatpush1.msra.mxu0 %v207
    %595 = vmatprep.subr.mxu0 0.0
    %596 = vmatpush1.msra.mxu0 %v206
    %597 = vmatprep.subr.mxu0 0.0
    %598 = vmatpush1.msra.mxu0 %v205
    %599 = vmatprep.subr.mxu0 0.0
    %600 = vmatpush1.msra.mxu0 %v204
    %601 = vmatprep.subr.mxu0 0.0
    %602 = vmatpush1.msra.mxu0 %v203
    %603 = vmatprep.subr.mxu0 0.0
    %604 = vmatpush1.msra.mxu0 %v202
    %605 = vmatprep.subr.mxu0 0.0
    %606 = vmatpush1.msra.mxu0 %v201
    %607 = vmatprep.subr.mxu0 0.0
    %608 = vmatpush1.msra.mxu0 %v200
    %609 = vmatprep.subr.mxu0 0.0
    %610 = vmatpush2.msra.mxu0 0.0
    %611 = vmatprep.subr.mxu0 0.0
    %612 = vmatpush2.msra.mxu0 0.0
    %613 = vmatprep.subr.mxu0 0.0
    %614 = vmatpush2.msra.mxu0 0.0
    %615 = vmatprep.subr.mxu0 0.0
    %616 = vmatpush2.msra.mxu0 0.0
    %617 = vmatprep.subr.mxu0 0.0
    %618 = vmatpush2.msra.mxu0 0.0
    %619 = vmatprep.subr.mxu0 0.0
    %620 = vmatpush2.msra.mxu0 0.0
    %621 = vmatprep.subr.mxu0 0.0
    %622 = vmatpush2.msra.mxu0 0.0
    %623 = vmatprep.subr.mxu0 0.0
    %624 = vmatpush2.msra.mxu0 0.0
    %625 = vmatprep.subr.mxu0 0.0
    %626 = vmatpush2.msra.mxu0 0.0
    %627 = vmatprep.subr.mxu0 0.0
    %628 = vmatpush2.msra.mxu0 0.0
    %629 = vmatprep.subr.mxu0 0.0
    %630 = vmatpush2.msra.mxu0 0.0
    %631 = vmatprep.subr.mxu0 0.0
    %632 = vmatpush2.msra.mxu0 0.0
    %633 = vmatprep.subr.mxu0 0.0
    %634 = vmatpush2.msra.mxu0 0.0
    %635 = vmatprep.subr.mxu0 0.0
    %636 = vmatpush2.msra.mxu0 0.0
    %637 = vmatprep.subr.mxu0 0.0
    %638 = vmatpush2.msra.mxu0 0.0
    %639 = vmatprep.subr.mxu0 0.0
    %640 = vmatpush2.msra.mxu0 0.0
    %641 = vmatprep.mubr.f32.mxu0 0.0
    %642 = vmatmul.mubr.f32.gmra.mxu0 %v576
    %v643 = vpop.f32.mrf.mxu0
    %v644 = vadd.f32 0.0, %v643
    %v645 = vpop.f32.mrf.mxu0
    %646 = vdwg.mxu0
    %v647 = vadd.f32 %v192, %v644
    %v648 = vtanh.pop %v647
    %649 = vmatprep.subr.mxu0 0.0
    %650 = vmatpush1.msra.mxu0 %v215
    %651 = vmatprep.subr.mxu0 0.0
    %652 = vmatpush1.msra.mxu0 %v214
    %653 = vmatprep.subr.mxu0 0.0
    %654 = vmatpush1.msra.mxu0 %v213
    %655 = vmatprep.subr.mxu0 0.0
    %656 = vmatpush1.msra.mxu0 %v212
    %657 = vmatprep.subr.mxu0 0.0
    %658 = vmatpush1.msra.mxu0 %v211
    %659 = vmatprep.subr.mxu0 0.0
    %660 = vmatpush1.msra.mxu0 %v210
    %661 = vmatprep.subr.mxu0 0.0
    %662 = vmatpush1.msra.mxu0 %v209
    %663 = vmatprep.subr.mxu0 0.0
    %664 = vmatpush1.msra.mxu0 %v208
    %665 = vmatprep.subr.mxu0 0.0
    %666 = vmatpush1.msra.mxu0 %v207
    %667 = vmatprep.subr.mxu0 0.0
    %668 = vmatpush1.msra.mxu0 %v206
    %669 = vmatprep.subr.mxu0 0.0
    %670 = vmatpush1.msra.mxu0 %v205
    %671 = vmatprep.subr.mxu0 0.0
    %672 = vmatpush1.msra.mxu0 %v204
    %673 = vmatprep.subr.mxu0 0.0
    %674 = vmatpush1.msra.mxu0 %v203
    %675 = vmatprep.subr.mxu0 0.0
    %676 = vmatpush1.msra.mxu0 %v202
    %677 = vmatprep.subr.mxu0 0.0
    %678 = vmatpush1.msra.mxu0 %v201
    %679 = vmatprep.subr.mxu0 0.0
    %680 = vmatpush1.msra.mxu0 %v200
    %681 = vmatprep.subr.mxu0 0.0
    %682 = vmatpush2.msra.mxu0 0.0
    %683 = vmatprep.subr.mxu0 0.0
    %684 = vmatpush2.msra.mxu0 0.0
    %685 = vmatprep.subr.mxu0 0.0
    %686 = vmatpush2.msra.mxu0 0.0
    %687 = vmatprep.subr.mxu0 0.0
    %688 = vmatpush2.msra.mxu0 0.0
    %689 = vmatprep.subr.mxu0 0.0
    %690 = vmatpush2.msra.mxu0 0.0
    %691 = vmatprep.subr.mxu0 0.0
    %692 = vmatpush2.msra.mxu0 0.0
    %693 = vmatprep.subr.mxu0 0.0
    %694 = vmatpush2.msra.mxu0 0.0
    %695 = vmatprep.subr.mxu0 0.0
    %696 = vmatpush2.msra.mxu0 0.0
    %697 = vmatprep.subr.mxu0 0.0
    %698 = vmatpush2.msra.mxu0 0.0
    %699 = vmatprep.subr.mxu0 0.0
    %700 = vmatpush2.msra.mxu0 0.0
    %701 = vmatprep.subr.mxu0 0.0
    %702 = vmatpush2.msra.mxu0 0.0
    %703 = vmatprep.subr.mxu0 0.0
    %704 = vmatpush2.msra.mxu0 0.0
    %705 = vmatprep.subr.mxu0 0.0
    %706 = vmatpush2.msra.mxu0 0.0
    %707 = vmatprep.subr.mxu0 0.0
    %708 = vmatpush2.msra.mxu0 0.0
    %709 = vmatprep.subr.mxu0 0.0
    %710 = vmatpush2.msra.mxu0 0.0
    %711 = vmatprep.subr.mxu0 0.0
    %712 = vmatpush2.msra.mxu0 0.0
    %713 = vmatprep.mubr.f32.mxu0 0.0
    %714 = vmatmul.mubr.f32.gmra.mxu0 %v648
    %v715 = vpop.f32.mrf.mxu0
    %v716 = vadd.f32 0.0, %v715
    %v717 = vpop.f32.mrf.mxu0
    %718 = vdwg.mxu0
    %v719 = vadd.f32 %v197, %v716
    %v720 = vtanh.pop %v719
    %v721 = vmax.f32 %v720, 0.0
    %v722 = vld [vmem:[#allocation6] sm:$0xff]
    %v723 = vld [vmem:[#allocation6 + $0x8] sm:$0xff]
    %v724 = vld [vmem:[#allocation6 + $0x10] sm:$0xff]
    %v725 = vld [vmem:[#allocation6 + $0x18] sm:$0xff]
    %v726 = vld [vmem:[#allocation6 + $0x20] sm:$0xff]
    %v727 = vld [vmem:[#allocation6 + $0x28] sm:$0xff]
    %v728 = vld [vmem:[#allocation6 + $0x30] sm:$0xff]
    %v729 = vld [vmem:[#allocation6 + $0x38] sm:$0xff]
    %v730 = vld [vmem:[#allocation6 + $0x40] sm:$0xff]
    %v731 = vld [vmem:[#allocation6 + $0x48] sm:$0xff]
    %v732 = vld [vmem:[#allocation6 + $0x50] sm:$0xff]
    %v733 = vld [vmem:[#allocation6 + $0x58] sm:$0xff]
    %v734 = vld [vmem:[#allocation6 + $0x60] sm:$0xff]
    %v735 = vld [vmem:[#allocation6 + $0x68] sm:$0xff]
    %v736 = vld [vmem:[#allocation6 + $0x70] sm:$0xff]
    %v737 = vld [vmem:[#allocation6 + $0x78] sm:$0xff]
    %v738 = vld [vmem:[%s5] sm:$0x1]
    %v740 = vlaneseq
    %v741 = vshrl.u32 %v740, 7
    %v742 = vsub.s32 0, %v741
    %v743 = vrot.slane %v738, %v742
    %745 = vmatprep.subr.mxu0 0.0
    %746 = vmatpush1.msra.mxu0 %v737
    %747 = vmatprep.subr.mxu0 0.0
    %748 = vmatpush1.msra.mxu0 %v736
    %749 = vmatprep.subr.mxu0 0.0
    %750 = vmatpush1.msra.mxu0 %v735
    %751 = vmatprep.subr.mxu0 0.0
    %752 = vmatpush1.msra.mxu0 %v734
    %753 = vmatprep.subr.mxu0 0.0
    %754 = vmatpush1.msra.mxu0 %v733
    %755 = vmatprep.subr.mxu0 0.0
    %756 = vmatpush1.msra.mxu0 %v732
    %757 = vmatprep.subr.mxu0 0.0
    %758 = vmatpush1.msra.mxu0 %v731
    %759 = vmatprep.subr.mxu0 0.0
    %760 = vmatpush1.msra.mxu0 %v730
    %761 = vmatprep.subr.mxu0 0.0
    %762 = vmatpush1.msra.mxu0 %v729
    %763 = vmatprep.subr.mxu0 0.0
    %764 = vmatpush1.msra.mxu0 %v728
    %765 = vmatprep.subr.mxu0 0.0
    %766 = vmatpush1.msra.mxu0 %v727
    %767 = vmatprep.subr.mxu0 0.0
    %768 = vmatpush1.msra.mxu0 %v726
    %769 = vmatprep.subr.mxu0 0.0
    %770 = vmatpush1.msra.mxu0 %v725
    %771 = vmatprep.subr.mxu0 0.0
    %772 = vmatpush1.msra.mxu0 %v724
    %773 = vmatprep.subr.mxu0 0.0
    %774 = vmatpush1.msra.mxu0 %v723
    %775 = vmatprep.subr.mxu0 0.0
    %776 = vmatpush1.msra.mxu0 %v722
    %777 = vmatprep.subr.mxu0 0.0
    %778 = vmatpush2.msra.mxu0 0.0
    %779 = vmatprep.subr.mxu0 0.0
    %780 = vmatpush2.msra.mxu0 0.0
    %781 = vmatprep.subr.mxu0 0.0
    %782 = vmatpush2.msra.mxu0 0.0
    %783 = vmatprep.subr.mxu0 0.0
    %784 = vmatpush2.msra.mxu0 0.0
    %785 = vmatprep.subr.mxu0 0.0
    %786 = vmatpush2.msra.mxu0 0.0
    %787 = vmatprep.subr.mxu0 0.0
    %788 = vmatpush2.msra.mxu0 0.0
    %789 = vmatprep.subr.mxu0 0.0
    %790 = vmatpush2.msra.mxu0 0.0
    %791 = vmatprep.subr.mxu0 0.0
    %792 = vmatpush2.msra.mxu0 0.0
    %793 = vmatprep.subr.mxu0 0.0
    %794 = vmatpush2.msra.mxu0 0.0
    %795 = vmatprep.subr.mxu0 0.0
    %796 = vmatpush2.msra.mxu0 0.0
    %797 = vmatprep.subr.mxu0 0.0
    %798 = vmatpush2.msra.mxu0 0.0
    %799 = vmatprep.subr.mxu0 0.0
    %800 = vmatpush2.msra.mxu0 0.0
    %801 = vmatprep.subr.mxu0 0.0
    %802 = vmatpush2.msra.mxu0 0.0
    %803 = vmatprep.subr.mxu0 0.0
    %804 = vmatpush2.msra.mxu0 0.0
    %805 = vmatprep.subr.mxu0 0.0
    %806 = vmatpush2.msra.mxu0 0.0
    %807 = vmatprep.subr.mxu0 0.0
    %808 = vmatpush2.msra.mxu0 0.0
    %809 = vmatprep.mubr.f32.mxu0 0.0
    %810 = vmatmul.mubr.f32.gmra.mxu0 %v721
    %v811 = vpop.f32.mrf.mxu0
    %v812 = vadd.f32 %v743, %v811
    %v813 = vpop.f32.mrf.mxu0
    %814 = vdwg.mxu0
    %v815 = vxor.u32 %v812, 2147483648
    %v816 = vmul.f32 %v815, 1.442695
    %v817 = vpow.pop %v816
    %v818 = vadd.f32 %v817, 1.0
    %v819 = vrcp.pop %v818
    %v820 = vmul.f32 1.0, %v819
    %821 = vst [vmem:[%s6] sm:$0xff] %v820
    // Predicated region
    $region38: #{single_user_sequence_model.1} parent=1 // pred_check
      _
    $region39: #{single_user_sequence_model.1} parent=1 // pred_check_branch
      %823 = sbr.rel (0) target = $region41
    $region40: #{single_user_sequence_model.1} parent=1 // pred_region
      _
    $region41: #{single_user_sequence_model.1} parent=1 // pred_fallthru
      _
    // Predicated region
    $region42: #{single_user_sequence_model.1} parent=1 // pred_check
      _
    $region43: #{single_user_sequence_model.1} parent=1 // pred_check_branch
      %825 = sbr.rel (0) target = $region45
    $region44: #{single_user_sequence_model.1} parent=1 // pred_region
      _
    $region45: #{single_user_sequence_model.1} parent=1 // pred_fallthru
      _
    %826 = vsyncpa [#allocation3], 1
    %827 = vsyncpa [#allocation5], 1

</llo_original>
